<compile_context>
chip_gen: v7x
topology: tpu7x:2x2x1
jax: 0.10.0
libtpu: 0.0.40
codegen_flags: <defaults>
</compile_context>

<pallas_src>
import functools

import jax
import jax.numpy as jnp
from jax.experimental import pallas as pl
from jax.experimental.pallas import tpu as pltpu

NEG_SLOPE = 0.01  # torch.nn.LeakyReLU default


def _round_up(x, m):
    return ((x + m - 1) // m) * m


def _vmem_capacity_bytes():
    """Per-core VMEM capacity; conservative (v7x, 64 MiB) fallback if the query fails."""
    try:
        cap = getattr(pltpu.get_tpu_info(), "vmem_capacity_bytes", None)
        if cap:
            return int(cap)
    except Exception:
        pass
    return 64 << 20


def _mlp_kernel(x_ref, w1_ref, b1_ref, w2_ref, b2_ref, o_ref, *, out_valid):
    # x tile arrives in its native dtype; cast to bf16 in-kernel (cheap VPU op) so the HBM
    # side only ever reads x once, with no wrapper-side convert/pad round trip.
    x = x_ref[...].astype(jnp.bfloat16)                                       # (TB, in_feats)
    h = jnp.dot(x, w1_ref[...], preferred_element_type=jnp.float32)           # (TB, hid_p) f32
    h = h + b1_ref[...]
    h = jnp.where(h > 0, h, NEG_SLOPE * h)                                    # LeakyReLU (f32)

    y = jnp.dot(h.astype(jnp.bfloat16), w2_ref[...],
                preferred_element_type=jnp.float32)                           # (TB, out_p) f32
    y = y + b2_ref[...]
    y = jnp.where(y > 0, y, NEG_SLOPE * y)                                    # LeakyReLU

    # Mask padded logit lanes so log_softmax over the real `out_valid` classes is unchanged.
    lane = jax.lax.broadcasted_iota(jnp.int32, y.shape, 1)
    y = jnp.where(lane < out_valid, y, -1e30)

    # Stable log_softmax along dim=1.
    m = jnp.max(y, axis=1, keepdims=True)
    s = y - m
    lse = jnp.log(jnp.sum(jnp.exp(s), axis=1, keepdims=True))
    # Store only the real classes (narrow, full-extent last dim -> masked vst).  Out-of-bounds
    # batch rows of the last tile are dropped by the pipeline, so no post-kernel slicing.
    o_ref[...] = (s - lse)[:, :out_valid].astype(o_ref.dtype)


def mlp_forward(x, w1, b1, w2, b2, *, tb=1024):
    """x: any shape with leading batch dim; flattened to (B, in_feats) like torch's reshape."""
    B = x.shape[0]
    xf = x.reshape(B, -1)                      # metadata-only reshape; no pad, no cast
    in_feats = xf.shape[1]
    hid = w1.shape[1]
    out_feats = w2.shape[1]
    assert w1.shape == (in_feats, hid)
    assert w2.shape == (hid, out_feats)

    # Lane-dense 128 padding only on the (small) hidden/output feature dims of the weights.
    hid_p = _round_up(hid, 128)
    out_p = _round_up(out_feats, 128)

    w1p = jnp.zeros((in_feats, hid_p), jnp.bfloat16).at[:, :hid].set(w1.astype(jnp.bfloat16))
    b1p = jnp.zeros((1, hid_p), jnp.float32).at[:, :hid].set(
        b1.astype(jnp.float32).reshape(1, hid))
    w2p = jnp.zeros((hid_p, out_p), jnp.bfloat16).at[:hid, :out_feats].set(
        w2.astype(jnp.bfloat16))
    b2p = jnp.zeros((1, out_p), jnp.float32).at[:, :out_feats].set(
        b2.astype(jnp.float32).reshape(1, out_feats))

    # Generation-aware VMEM budget (v5e/v6e: 128 MiB -> ~100 MiB usable; v7x: 64 -> 56 MiB).
    budget = int(min(_vmem_capacity_bytes() - (8 << 20), 100 << 20))

    x_itemsize = jnp.dtype(xf.dtype).itemsize
    # Weights/biases are single-buffered (pl.Buffered(1)) so count them once.
    weights_bytes = (w1p.size + w2p.size) * 2 + (b1p.size + b2p.size) * 4

    def footprint(tb_rows):
        x_tiles = 2 * tb_rows * in_feats * x_itemsize             # double-buffered x tiles
        out_tiles = 2 * tb_rows * out_feats * 4                   # double-buffered out tiles
        interm = (tb_rows * in_feats * 2                          # bf16 cast of x
                  + tb_rows * hid_p * (4 + 2)                     # h f32 + bf16
                  + tb_rows * out_p * 4 * 4)                      # y / s / exp(s) / result f32
        return weights_bytes + x_tiles + out_tiles + interm + (2 << 20)

    # Batch tile: multiple of 8 sublanes; >= 2 grid steps when B allows (v7x megacore);
    # shrink until the footprint fits the VMEM budget.
    TB = max(8, min(tb, _round_up(pl.cdiv(B, 2), 8)))
    TB = _round_up(TB, 8)
    while TB > 8 and footprint(TB) > budget:
        TB = _round_up(max(TB // 2, 8), 8)
    # TODO(synk): for huge flattened in_feats where even TB=8 overflows the v7x budget, add a
    # K-tiled path (grid=(B//TB, K//TK) + f32 accumulator scratch) instead of shrinking TB.

    grid = (pl.cdiv(B, TB),)
    vmem_limit = int(max(budget, 32 << 20))

    flops = 2 * B * (in_feats * hid_p + hid_p * out_p)
    bytes_accessed = (xf.size * x_itemsize + w1p.size * 2 + w2p.size * 2
                      + b1p.size * 4 + b2p.size * 4 + B * out_feats * 4)

    return pl.pallas_call(
        functools.partial(_mlp_kernel, out_valid=out_feats),
        out_shape=jax.ShapeDtypeStruct((B, out_feats), jnp.float32),
        grid_spec=pltpu.PrefetchScalarGridSpec(
            num_scalar_prefetch=0,
            grid=grid,
            in_specs=[
                pl.BlockSpec((TB, in_feats), lambda i: (i, 0)),             # x: batch-tiled, pipelined
                pl.BlockSpec((in_feats, hid_p), lambda i: (0, 0),
                             pipeline_mode=pl.Buffered(1)),                 # w1: resident, single-buffered
                pl.BlockSpec((1, hid_p), lambda i: (0, 0),
                             pipeline_mode=pl.Buffered(1)),                 # b1
                pl.BlockSpec((hid_p, out_p), lambda i: (0, 0),
                             pipeline_mode=pl.Buffered(1)),                 # w2
                pl.BlockSpec((1, out_p), lambda i: (0, 0),
                             pipeline_mode=pl.Buffered(1)),                 # b2
            ],
            out_specs=pl.BlockSpec((TB, out_feats), lambda i: (i, 0)),      # narrow, no padded writeback
        ),
        compiler_params=pltpu.CompilerParams(
            dimension_semantics=("parallel",),
            vmem_limit_bytes=vmem_limit,
        ),
        cost_estimate=pl.CostEstimate(
            flops=flops,
            transcendentals=B * (out_p + 1),     # exp per lane + log per row
            bytes_accessed=bytes_accessed,
        ),
    )(xf, w1p, b1p, w2p, b2p)


def init_params(key, in_feats, hid_feats, out_feats):
    """Deterministic init mimicking torch Linear's uniform(-1/sqrt(fan_in), 1/sqrt(fan_in))."""
    k1, k2, k3, k4 = jax.random.split(key, 4)
    bound1 = 1.0 / (in_feats ** 0.5)
    bound2 = 1.0 / (hid_feats ** 0.5)
    w1 = jax.random.uniform(k1, (in_feats, hid_feats), jnp.float32, -bound1, bound1)
    b1 = jax.random.uniform(k2, (hid_feats,), jnp.float32, -bound1, bound1)
    w2 = jax.random.uniform(k3, (hid_feats, out_feats), jnp.float32, -bound2, bound2)
    b2 = jax.random.uniform(k4, (out_feats,), jnp.float32, -bound2, bound2)
    return w1, b1, w2, b2


def _reference_bf16(x, w1, b1, w2, b2):
    """Matches the kernel's numerics: bf16 matmul inputs, f32 accumulate/elementwise."""
    xf = x.reshape(x.shape[0], -1).astype(jnp.bfloat16)
    h = jnp.dot(xf, w1.astype(jnp.bfloat16), preferred_element_type=jnp.float32) + b1
    h = jnp.where(h > 0, h, NEG_SLOPE * h)
    y = jnp.dot(h.astype(jnp.bfloat16), w2.astype(jnp.bfloat16),
                preferred_element_type=jnp.float32) + b2
    y = jnp.where(y > 0, y, NEG_SLOPE * y)
    return jax.nn.log_softmax(y, axis=1)


def _reference_f32(x, w1, b1, w2, b2):
    """Full-f32 reference (mirrors the torch module exactly)."""
    xf = x.reshape(x.shape[0], -1).astype(jnp.float32)
    h = xf @ w1 + b1
    h = jnp.where(h > 0, h, NEG_SLOPE * h)
    y = h @ w2 + b2
    y = jnp.where(y > 0, y, NEG_SLOPE * y)
    return jax.nn.log_softmax(y, axis=1)


if __name__ == "__main__":
    key = jax.random.PRNGKey(0)
    kx, kp = jax.random.split(key)

    # Example input consistent with the forward's reshape: NCHW image flattened per-sample.
    B, C, H, W = 2, 4, 16, 16
    in_feats = C * H * W      # 1024
    hid_feats = 32
    out_feats = 10

    x = jax.random.normal(kx, (B, C, H, W), jnp.float32)
    w1, b1, w2, b2 = init_params(kp, in_feats, hid_feats, out_feats)

    fwd = jax.jit(mlp_forward)
    out = jax.block_until_ready(fwd(x, w1, b1, w2, b2))

    assert out.shape == (B, out_feats)
    ref_bf16 = _reference_bf16(x, w1, b1, w2, b2)
    ref_f32 = _reference_f32(x, w1, b1, w2, b2)
    assert jnp.allclose(out, ref_bf16, atol=2e-3, rtol=2e-3), "mismatch vs bf16-matmul reference"
    assert jnp.allclose(out, ref_f32, atol=5e-2, rtol=5e-2), "mismatch vs f32 reference"

    print("KERNEL_OK")
</pallas_src>

<mosaic_0001>
module attributes {stable_mosaic.version = 11 : i64} {
  func.func @_mlp_kernel(%arg0: i32, %arg1: memref<8x1024xf32, #tpu.memory_space<vmem>>, %arg2: memref<1024x128xbf16, #tpu.memory_space<vmem>>, %arg3: memref<1x128xf32, #tpu.memory_space<vmem>>, %arg4: memref<128x128xbf16, #tpu.memory_space<vmem>>, %arg5: memref<1x128xf32, #tpu.memory_space<vmem>>, %arg6: memref<8x10xf32, #tpu.memory_space<vmem>>) attributes {dimension_semantics = [#tpu.dimension_semantics<parallel>], iteration_bounds = array<i64: 1>, scalar_prefetch = 0 : i64, scratch_operands = 0 : i64, tpu.core_type = #tpu.core_type<tc>, window_params = [{transform_indices = @transform_0, window_bounds = array<i64: 8, 1024>}, {pipeline_mode = #tpu.pipeline_mode<synchronous>, transform_indices = @transform_1, window_bounds = array<i64: 1024, 128>}, {pipeline_mode = #tpu.pipeline_mode<synchronous>, transform_indices = @transform_2, window_bounds = array<i64: 1, 128>}, {pipeline_mode = #tpu.pipeline_mode<synchronous>, transform_indices = @transform_3, window_bounds = array<i64: 128, 128>}, {pipeline_mode = #tpu.pipeline_mode<synchronous>, transform_indices = @transform_4, window_bounds = array<i64: 1, 128>}, {transform_indices = @transform_5, window_bounds = array<i64: 8, 10>}]} {
    %c0 = arith.constant 0 : index
    %c0_0 = arith.constant 0 : index
    %0 = vector.load %arg1[%c0, %c0_0] : memref<8x1024xf32, #tpu.memory_space<vmem>>, vector<8x1024xf32>
    %1 = arith.truncf %0 : vector<8x1024xf32> to vector<8x1024xbf16>
    %c0_1 = arith.constant 0 : index
    %c0_2 = arith.constant 0 : index
    %2 = vector.load %arg2[%c0_1, %c0_2] : memref<1024x128xbf16, #tpu.memory_space<vmem>>, vector<1024x128xbf16>
    %cst = arith.constant dense<0.000000e+00> : vector<8x128xf32>
    %3 = tpu.matmul %1, %2, %cst {dimension_numbers = #tpu.dot_dimension_numbers<[1], [0], [0], [1], [0, 0, 1, 1], [], []>} : vector<8x1024xbf16>, vector<1024x128xbf16>, vector<8x128xf32> -> vector<8x128xf32>
    %c0_3 = arith.constant 0 : index
    %c0_4 = arith.constant 0 : index
    %4 = vector.load %arg3[%c0_3, %c0_4] : memref<1x128xf32, #tpu.memory_space<vmem>>, vector<1x128xf32>
    %5 = vector.broadcast %4 : vector<1x128xf32> to vector<8x128xf32>
    %6 = arith.addf %3, %5 : vector<8x128xf32>
    %cst_5 = arith.constant 0.000000e+00 : f32
    %7 = vector.broadcast %cst_5 : f32 to vector<8x128xf32>
    %8 = arith.cmpf ogt, %6, %7 : vector<8x128xf32>
    %cst_6 = arith.constant 0.00999999977 : f32
    %9 = vector.broadcast %cst_6 : f32 to vector<8x128xf32>
    %10 = arith.mulf %9, %6 : vector<8x128xf32>
    %11 = arith.select %8, %6, %10 : vector<8x128xi1>, vector<8x128xf32>
    %12 = arith.truncf %11 : vector<8x128xf32> to vector<8x128xbf16>
    %c0_7 = arith.constant 0 : index
    %c0_8 = arith.constant 0 : index
    %13 = vector.load %arg4[%c0_7, %c0_8] : memref<128x128xbf16, #tpu.memory_space<vmem>>, vector<128x128xbf16>
    %cst_9 = arith.constant dense<0.000000e+00> : vector<8x128xf32>
    %14 = tpu.matmul %12, %13, %cst_9 {dimension_numbers = #tpu.dot_dimension_numbers<[1], [0], [0], [1], [0, 0, 1, 1], [], []>} : vector<8x128xbf16>, vector<128x128xbf16>, vector<8x128xf32> -> vector<8x128xf32>
    %c0_10 = arith.constant 0 : index
    %c0_11 = arith.constant 0 : index
    %15 = vector.load %arg5[%c0_10, %c0_11] : memref<1x128xf32, #tpu.memory_space<vmem>>, vector<1x128xf32>
    %16 = vector.broadcast %15 : vector<1x128xf32> to vector<8x128xf32>
    %17 = arith.addf %14, %16 : vector<8x128xf32>
    %cst_12 = arith.constant 0.000000e+00 : f32
    %18 = vector.broadcast %cst_12 : f32 to vector<8x128xf32>
    %19 = arith.cmpf ogt, %17, %18 : vector<8x128xf32>
    %cst_13 = arith.constant 0.00999999977 : f32
    %20 = vector.broadcast %cst_13 : f32 to vector<8x128xf32>
    %21 = arith.mulf %20, %17 : vector<8x128xf32>
    %22 = arith.select %19, %17, %21 : vector<8x128xi1>, vector<8x128xf32>
    %23 = tpu.iota {dimensions = array<i32: 1>} : vector<8x128xi32>
    %c10_i32 = arith.constant 10 : i32
    %24 = vector.broadcast %c10_i32 : i32 to vector<8x128xi32>
    %25 = arith.cmpi slt, %23, %24 : vector<8x128xi32>
    %cst_14 = arith.constant -1.000000e+30 : f32
    %26 = vector.broadcast %cst_14 : f32 to vector<8x128xf32>
    %27 = arith.select %25, %22, %26 : vector<8x128xi1>, vector<8x128xf32>
    %cst_15 = arith.constant dense<0xFF800000> : vector<8xf32>
    %28 = vector.multi_reduction <maximumf>, %27, %cst_15 [1] : vector<8x128xf32> to vector<8xf32>
    %29 = vector.shape_cast %28 : vector<8xf32> to vector<8x1xf32>
    %30 = vector.broadcast %29 : vector<8x1xf32> to vector<8x128xf32>
    %31 = arith.subf %27, %30 : vector<8x128xf32>
    %32 = math.exp %31 : vector<8x128xf32>
    %cst_16 = arith.constant dense<0.000000e+00> : vector<8xf32>
    %33 = vector.multi_reduction <add>, %32, %cst_16 [1] : vector<8x128xf32> to vector<8xf32>
    %34 = vector.shape_cast %33 : vector<8xf32> to vector<8x1xf32>
    %35 = math.log %34 : vector<8x1xf32>
    %36 = vector.broadcast %35 : vector<8x1xf32> to vector<8x128xf32>
    %37 = arith.subf %31, %36 : vector<8x128xf32>
    %38 = vector.extract_strided_slice %37 {offsets = [0, 0], sizes = [8, 10], strides = [1, 1]} : vector<8x128xf32> to vector<8x10xf32>
    %c0_17 = arith.constant 0 : index
    %c0_18 = arith.constant 0 : index
    %39 = vector.load %arg6[%c0_17, %c0_18] : memref<8x10xf32, #tpu.memory_space<vmem>>, vector<8x10xf32>
    tpu.vector_store %arg6[%c0_17, %c0_18], %38 {strides = array<i32>} : memref<8x10xf32, #tpu.memory_space<vmem>>, vector<8x10xf32>,
    return
  }
  func.func @transform_0(%arg0: i32) -> (i32, i32) {
    %c0_i32 = arith.constant 0 : i32
    %c0_i32_0 = arith.constant 0 : i32
    return %arg0, %c0_i32 : i32, i32
  }
  func.func @transform_1(%arg0: i32) -> (i32, i32) {
    %c0_i32 = arith.constant 0 : i32
    %c0_i32_0 = arith.constant 0 : i32
    %c0_i32_1 = arith.constant 0 : i32
    return %c0_i32, %c0_i32_0 : i32, i32
  }
  func.func @transform_2(%arg0: i32) -> (i32, i32) {
    %c0_i32 = arith.constant 0 : i32
    %c0_i32_0 = arith.constant 0 : i32
    %c0_i32_1 = arith.constant 0 : i32
    return %c0_i32, %c0_i32_0 : i32, i32
  }
  func.func @transform_3(%arg0: i32) -> (i32, i32) {
    %c0_i32 = arith.constant 0 : i32
    %c0_i32_0 = arith.constant 0 : i32
    %c0_i32_1 = arith.constant 0 : i32
    return %c0_i32, %c0_i32_0 : i32, i32
  }
  func.func @transform_4(%arg0: i32) -> (i32, i32) {
    %c0_i32 = arith.constant 0 : i32
    %c0_i32_0 = arith.constant 0 : i32
    %c0_i32_1 = arith.constant 0 : i32
    return %c0_i32, %c0_i32_0 : i32, i32
  }
  func.func @transform_5(%arg0: i32) -> (i32, i32) {
    %c0_i32 = arith.constant 0 : i32
    %c0_i32_0 = arith.constant 0 : i32
    return %arg0, %c0_i32 : i32, i32
  }
}

</mosaic_0001>

<llo_original>
// kernel: mlp_forward.1
$region0: #{mlp_forward.1}
  #allocation0 [shape = 'u32[]', space=smem, size = 0x4, offset = 0x4, fixed_abs, tag = 'smem constant byte address 0x4 - core index']
  #allocation1 [shape = 'u32[144,128]{1,0:T(1,128)}', space=vmem, size = 0x12000, scoped, tag = 'internal scratch']
  %s0 = inlined_call_operand.vmem [shape: f32[2,1024], index: 0, kind: input, shape index: {}]
  %s1 = inlined_call_operand.vmem [shape: bf16[1024,128], index: 1, kind: input, shape index: {}]
  %s2 = inlined_call_operand.vmem [shape: f32[1,128], index: 2, kind: input, shape index: {}]
  %s3 = inlined_call_operand.vmem [shape: bf16[128,128], index: 3, kind: input, shape index: {}]
  %s4 = inlined_call_operand.vmem [shape: f32[1,128], index: 4, kind: input, shape index: {}]
  %s5 = inlined_call_operand.hbm [shape: f32[2,10], index: 5, kind: output, shape index: {}]
  %s6 = sld [smem:[#allocation0]]
  $region30: #{mlp_forward.1} parent=0
    _
  %s8 = ssub.s32 1, %s6
  %s9 = scalar_select 0, %s8, %s6
  $region1: #{mlp_forward.1} parent=0
    #allocation2 [shape = 'u8[4096]{0}', space=vmem, size = 0x1000, scoped, tag = 'output window, operand 0, single buffered']
    #allocation3 [shape = 's32[1]{0}', space=sflag, size = 0x4, scoped, tag = 'scoped memory for mlp_forward.1']
    %10 = vsyncpa [#allocation3], 0
    // Predicated region
    $region2: #{mlp_forward.1} parent=1 // pred_check
      _
    $region3: #{mlp_forward.1} parent=1 // pred_check_branch
      %12 = sbr.rel (0) target = $region5
    $region4: #{mlp_forward.1} parent=1 // pred_region
      _
    $region5: #{mlp_forward.1} parent=1 // pred_fallthru
      _
    // Predicated region
    $region6: #{mlp_forward.1} parent=1 // pred_check
      _
    $region7: #{mlp_forward.1} parent=1 // pred_check_branch
      %14 = sbr.rel (0) target = $region9
    $region8: #{mlp_forward.1} parent=1 // pred_region
      _
    $region9: #{mlp_forward.1} parent=1 // pred_fallthru
      _
    // Predicated region
    $region10: #{mlp_forward.1} parent=1 // pred_check
      _
    $region11: #{mlp_forward.1} parent=1 // pred_check_branch
      %16 = sbr.rel (0) target = $region13
    $region12: #{mlp_forward.1} parent=1 // pred_region
      _
    $region13: #{mlp_forward.1} parent=1 // pred_fallthru
      _
    // Predicated region
    $region14: #{mlp_forward.1} parent=1 // pred_check
      _
    $region15: #{mlp_forward.1} parent=1 // pred_check_branch
      %18 = sbr.rel (0) target = $region17
    $region16: #{mlp_forward.1} parent=1 // pred_region
      _
    $region17: #{mlp_forward.1} parent=1 // pred_fallthru
      _
    // Predicated region
    $region18: #{mlp_forward.1} parent=1 // pred_check
      _
    $region19: #{mlp_forward.1} parent=1 // pred_check_branch
      %20 = sbr.rel (0) target = $region21
    $region20: #{mlp_forward.1} parent=1 // pred_region
      _
    $region21: #{mlp_forward.1} parent=1 // pred_fallthru
      _
    %v22 = vld [vmem:[%s0] sm:$0xff]
    %v23 = vld [vmem:[%s0 + $0x8] sm:$0xff]
    %v24 = vld [vmem:[%s0 + $0x10] sm:$0xff]
    %v25 = vld [vmem:[%s0 + $0x18] sm:$0xff]
    %v26 = vld [vmem:[%s0 + $0x20] sm:$0xff]
    %v27 = vld [vmem:[%s0 + $0x28] sm:$0xff]
    %v28 = vld [vmem:[%s0 + $0x30] sm:$0xff]
    %v29 = vld [vmem:[%s0 + $0x38] sm:$0xff]
    %v38 = vcombine.low %v22, %v24
    %v39 = vcombine.high %v22, %v24
    %v40 = vcombine.low %v26, %v28
    %v41 = vcombine.high %v26, %v28
    %v43 = vunpack.c.l.s4 1983009808
    %v44 = vunpack.c.0.s8 %v43
    %v45 = vlaneseq
    %v46 = vshrl.u32 %v45, 7
    %v47 = vsub.s32 %v44, %v46
    %v48 = vrot.slane %v38, %v47
    %v50 = vunpack.c.l.s4 1983009808
    %v51 = vunpack.c.0.s8 %v50
    %v52 = vlaneseq
    %v53 = vshrl.u32 %v52, 7
    %v54 = vsub.s32 %v51, %v53
    %v55 = vrot.slane %v39, %v54
    %v57 = vunpack.c.l.s4 1983009808
    %v58 = vunpack.c.0.s8 %v57
    %v59 = vlaneseq
    %v60 = vshrl.u32 %v59, 7
    %v61 = vsub.s32 %v58, %v60
    %v62 = vrot.slane %v40, %v61
    %v64 = vunpack.c.l.s4 1983009808
    %v65 = vunpack.c.0.s8 %v64
    %v66 = vlaneseq
    %v67 = vshrl.u32 %v66, 7
    %v68 = vsub.s32 %v65, %v67
    %v69 = vrot.slane %v41, %v68
    %v70 = vcombine.low %v48, %v62
    %v71 = vcombine.high %v48, %v62
    %v72 = vcombine.low %v55, %v69
    %v73 = vcombine.high %v55, %v69
    %v74 = vcombine.low %v23, %v25
    %v75 = vcombine.high %v23, %v25
    %v76 = vcombine.low %v27, %v29
    %v77 = vcombine.high %v27, %v29
    %v79 = vunpack.c.l.s4 1983009808
    %v80 = vunpack.c.0.s8 %v79
    %v81 = vlaneseq
    %v82 = vshrl.u32 %v81, 7
    %v83 = vsub.s32 %v80, %v82
    %v84 = vrot.slane %v74, %v83
    %v86 = vunpack.c.l.s4 1983009808
    %v87 = vunpack.c.0.s8 %v86
    %v88 = vlaneseq
    %v89 = vshrl.u32 %v88, 7
    %v90 = vsub.s32 %v87, %v89
    %v91 = vrot.slane %v75, %v90
    %v93 = vunpack.c.l.s4 1983009808
    %v94 = vunpack.c.0.s8 %v93
    %v95 = vlaneseq
    %v96 = vshrl.u32 %v95, 7
    %v97 = vsub.s32 %v94, %v96
    %v98 = vrot.slane %v76, %v97
    %v100 = vunpack.c.l.s4 1983009808
    %v101 = vunpack.c.0.s8 %v100
    %v102 = vlaneseq
    %v103 = vshrl.u32 %v102, 7
    %v104 = vsub.s32 %v101, %v103
    %v105 = vrot.slane %v77, %v104
    %v106 = vcombine.low %v84, %v98
    %v107 = vcombine.high %v84, %v98
    %v108 = vcombine.low %v91, %v105
    %v109 = vcombine.high %v91, %v105
    %v118 = vpack.c.bf16 %v70, %v70
    %v119 = vpack.c.bf16 %v71, %v71
    %v120 = vpack.c.bf16 %v72, %v72
    %v121 = vpack.c.bf16 %v73, %v73
    %v122 = vpack.c.bf16 %v106, %v106
    %v123 = vpack.c.bf16 %v107, %v107
    %v124 = vpack.c.bf16 %v108, %v108
    %v125 = vpack.c.bf16 %v109, %v109
    %v126 = vld [vmem:[%s1] sm:$0xf]
    %v127 = vld [vmem:[%s1 + $0x4] sm:$0xf]
    %v128 = vld [vmem:[%s1 + $0x8] sm:$0xf]
    %v129 = vld [vmem:[%s1 + $0xc] sm:$0xf]
    %v130 = vld [vmem:[%s1 + $0x10] sm:$0xf]
    %v131 = vld [vmem:[%s1 + $0x14] sm:$0xf]
    %v132 = vld [vmem:[%s1 + $0x18] sm:$0xf]
    %v133 = vld [vmem:[%s1 + $0x1c] sm:$0xf]
    %v134 = vld [vmem:[%s1 + $0x20] sm:$0xf]
    %v135 = vld [vmem:[%s1 + $0x24] sm:$0xf]
    %v136 = vld [vmem:[%s1 + $0x28] sm:$0xf]
    %v137 = vld [vmem:[%s1 + $0x2c] sm:$0xf]
    %v138 = vld [vmem:[%s1 + $0x30] sm:$0xf]
    %v139 = vld [vmem:[%s1 + $0x34] sm:$0xf]
    %v140 = vld [vmem:[%s1 + $0x38] sm:$0xf]
    %v141 = vld [vmem:[%s1 + $0x3c] sm:$0xf]
    %v142 = vld [vmem:[%s1 + $0x40] sm:$0xf]
    %v143 = vld [vmem:[%s1 + $0x44] sm:$0xf]
    %v144 = vld [vmem:[%s1 + $0x48] sm:$0xf]
    %v145 = vld [vmem:[%s1 + $0x4c] sm:$0xf]
    %v146 = vld [vmem:[%s1 + $0x50] sm:$0xf]
    %v147 = vld [vmem:[%s1 + $0x54] sm:$0xf]
    %v148 = vld [vmem:[%s1 + $0x58] sm:$0xf]
    %v149 = vld [vmem:[%s1 + $0x5c] sm:$0xf]
    %v150 = vld [vmem:[%s1 + $0x60] sm:$0xf]
    %v151 = vld [vmem:[%s1 + $0x64] sm:$0xf]
    %v152 = vld [vmem:[%s1 + $0x68] sm:$0xf]
    %v153 = vld [vmem:[%s1 + $0x6c] sm:$0xf]
    %v154 = vld [vmem:[%s1 + $0x70] sm:$0xf]
    %v155 = vld [vmem:[%s1 + $0x74] sm:$0xf]
    %v156 = vld [vmem:[%s1 + $0x78] sm:$0xf]
    %v157 = vld [vmem:[%s1 + $0x7c] sm:$0xf]
    %v158 = vld [vmem:[%s1 + $0x80] sm:$0xf]
    %v159 = vld [vmem:[%s1 + $0x84] sm:$0xf]
    %v160 = vld [vmem:[%s1 + $0x88] sm:$0xf]
    %v161 = vld [vmem:[%s1 + $0x8c] sm:$0xf]
    %v162 = vld [vmem:[%s1 + $0x90] sm:$0xf]
    %v163 = vld [vmem:[%s1 + $0x94] sm:$0xf]
    %v164 = vld [vmem:[%s1 + $0x98] sm:$0xf]
    %v165 = vld [vmem:[%s1 + $0x9c] sm:$0xf]
    %v166 = vld [vmem:[%s1 + $0xa0] sm:$0xf]
    %v167 = vld [vmem:[%s1 + $0xa4] sm:$0xf]
    %v168 = vld [vmem:[%s1 + $0xa8] sm:$0xf]
    %v169 = vld [vmem:[%s1 + $0xac] sm:$0xf]
    %v170 = vld [vmem:[%s1 + $0xb0] sm:$0xf]
    %v171 = vld [vmem:[%s1 + $0xb4] sm:$0xf]
    %v172 = vld [vmem:[%s1 + $0xb8] sm:$0xf]
    %v173 = vld [vmem:[%s1 + $0xbc] sm:$0xf]
    %v174 = vld [vmem:[%s1 + $0xc0] sm:$0xf]
    %v175 = vld [vmem:[%s1 + $0xc4] sm:$0xf]
    %v176 = vld [vmem:[%s1 + $0xc8] sm:$0xf]
    %v177 = vld [vmem:[%s1 + $0xcc] sm:$0xf]
    %v178 = vld [vmem:[%s1 + $0xd0] sm:$0xf]
    %v179 = vld [vmem:[%s1 + $0xd4] sm:$0xf]
    %v180 = vld [vmem:[%s1 + $0xd8] sm:$0xf]
    %v181 = vld [vmem:[%s1 + $0xdc] sm:$0xf]
    %v182 = vld [vmem:[%s1 + $0xe0] sm:$0xf]
    %v183 = vld [vmem:[%s1 + $0xe4] sm:$0xf]
    %v184 = vld [vmem:[%s1 + $0xe8] sm:$0xf]
    %v185 = vld [vmem:[%s1 + $0xec] sm:$0xf]
    %v186 = vld [vmem:[%s1 + $0xf0] sm:$0xf]
    %v187 = vld [vmem:[%s1 + $0xf4] sm:$0xf]
    %v188 = vld [vmem:[%s1 + $0xf8] sm:$0xf]
    %v189 = vld [vmem:[%s1 + $0xfc] sm:$0xf]
    %v190 = vld [vmem:[%s1 + $0x100] sm:$0xf]
    %v191 = vld [vmem:[%s1 + $0x104] sm:$0xf]
    %v192 = vld [vmem:[%s1 + $0x108] sm:$0xf]
    %v193 = vld [vmem:[%s1 + $0x10c] sm:$0xf]
    %v194 = vld [vmem:[%s1 + $0x110] sm:$0xf]
    %v195 = vld [vmem:[%s1 + $0x114] sm:$0xf]
    %v196 = vld [vmem:[%s1 + $0x118] sm:$0xf]
    %v197 = vld [vmem:[%s1 + $0x11c] sm:$0xf]
    %v198 = vld [vmem:[%s1 + $0x120] sm:$0xf]
    %v199 = vld [vmem:[%s1 + $0x124] sm:$0xf]
    %v200 = vld [vmem:[%s1 + $0x128] sm:$0xf]
    %v201 = vld [vmem:[%s1 + $0x12c] sm:$0xf]
    %v202 = vld [vmem:[%s1 + $0x130] sm:$0xf]
    %v203 = vld [vmem:[%s1 + $0x134] sm:$0xf]
    %v204 = vld [vmem:[%s1 + $0x138] sm:$0xf]
    %v205 = vld [vmem:[%s1 + $0x13c] sm:$0xf]
    %v206 = vld [vmem:[%s1 + $0x140] sm:$0xf]
    %v207 = vld [vmem:[%s1 + $0x144] sm:$0xf]
    %v208 = vld [vmem:[%s1 + $0x148] sm:$0xf]
    %v209 = vld [vmem:[%s1 + $0x14c] sm:$0xf]
    %v210 = vld [vmem:[%s1 + $0x150] sm:$0xf]
    %v211 = vld [vmem:[%s1 + $0x154] sm:$0xf]
    %v212 = vld [vmem:[%s1 + $0x158] sm:$0xf]
    %v213 = vld [vmem:[%s1 + $0x15c] sm:$0xf]
    %v214 = vld [vmem:[%s1 + $0x160] sm:$0xf]
    %v215 = vld [vmem:[%s1 + $0x164] sm:$0xf]
    %v216 = vld [vmem:[%s1 + $0x168] sm:$0xf]
    %v217 = vld [vmem:[%s1 + $0x16c] sm:$0xf]
    %v218 = vld [vmem:[%s1 + $0x170] sm:$0xf]
    %v219 = vld [vmem:[%s1 + $0x174] sm:$0xf]
    %v220 = vld [vmem:[%s1 + $0x178] sm:$0xf]
    %v221 = vld [vmem:[%s1 + $0x17c] sm:$0xf]
    %v222 = vld [vmem:[%s1 + $0x180] sm:$0xf]
    %v223 = vld [vmem:[%s1 + $0x184] sm:$0xf]
    %v224 = vld [vmem:[%s1 + $0x188] sm:$0xf]
    %v225 = vld [vmem:[%s1 + $0x18c] sm:$0xf]
    %v226 = vld [vmem:[%s1 + $0x190] sm:$0xf]
    %v227 = vld [vmem:[%s1 + $0x194] sm:$0xf]
    %v228 = vld [vmem:[%s1 + $0x198] sm:$0xf]
    %v229 = vld [vmem:[%s1 + $0x19c] sm:$0xf]
    %v230 = vld [vmem:[%s1 + $0x1a0] sm:$0xf]
    %v231 = vld [vmem:[%s1 + $0x1a4] sm:$0xf]
    %v232 = vld [vmem:[%s1 + $0x1a8] sm:$0xf]
    %v233 = vld [vmem:[%s1 + $0x1ac] sm:$0xf]
    %v234 = vld [vmem:[%s1 + $0x1b0] sm:$0xf]
    %v235 = vld [vmem:[%s1 + $0x1b4] sm:$0xf]
    %v236 = vld [vmem:[%s1 + $0x1b8] sm:$0xf]
    %v237 = vld [vmem:[%s1 + $0x1bc] sm:$0xf]
    %v238 = vld [vmem:[%s1 + $0x1c0] sm:$0xf]
    %v239 = vld [vmem:[%s1 + $0x1c4] sm:$0xf]
    %v240 = vld [vmem:[%s1 + $0x1c8] sm:$0xf]
    %v241 = vld [vmem:[%s1 + $0x1cc] sm:$0xf]
    %v242 = vld [vmem:[%s1 + $0x1d0] sm:$0xf]
    %v243 = vld [vmem:[%s1 + $0x1d4] sm:$0xf]
    %v244 = vld [vmem:[%s1 + $0x1d8] sm:$0xf]
    %v245 = vld [vmem:[%s1 + $0x1dc] sm:$0xf]
    %v246 = vld [vmem:[%s1 + $0x1e0] sm:$0xf]
    %v247 = vld [vmem:[%s1 + $0x1e4] sm:$0xf]
    %v248 = vld [vmem:[%s1 + $0x1e8] sm:$0xf]
    %v249 = vld [vmem:[%s1 + $0x1ec] sm:$0xf]
    %v250 = vld [vmem:[%s1 + $0x1f0] sm:$0xf]
    %v251 = vld [vmem:[%s1 + $0x1f4] sm:$0xf]
    %v252 = vld [vmem:[%s1 + $0x1f8] sm:$0xf]
    %v253 = vld [vmem:[%s1 + $0x1fc] sm:$0xf]
    %v254 = vld [vmem:[%s2] sm:$0x1]
    %v256 = vlaneseq
    %v257 = vshrl.u32 %v256, 7
    %v258 = vsub.s32 0, %v257
    %v259 = vrot.slane %v254, %v258
    %v389 = vunpack.c.l.b16 %v126
    %v390 = vunpack.c.l.b16 %v127
    %v391 = vunpack.c.l.b16 %v128
    %v392 = vunpack.c.l.b16 %v129
    %v393 = vunpack.c.l.b16 %v130
    %v394 = vunpack.c.l.b16 %v131
    %v395 = vunpack.c.l.b16 %v132
    %v396 = vunpack.c.l.b16 %v133
    %v397 = vunpack.c.l.b16 %v134
    %v398 = vunpack.c.l.b16 %v135
    %v399 = vunpack.c.l.b16 %v136
    %v400 = vunpack.c.l.b16 %v137
    %v401 = vunpack.c.l.b16 %v138
    %v402 = vunpack.c.l.b16 %v139
    %v403 = vunpack.c.l.b16 %v140
    %v404 = vunpack.c.l.b16 %v141
    %v405 = vunpack.c.l.b16 %v142
    %v406 = vunpack.c.l.b16 %v143
    %v407 = vunpack.c.l.b16 %v144
    %v408 = vunpack.c.l.b16 %v145
    %v409 = vunpack.c.l.b16 %v146
    %v410 = vunpack.c.l.b16 %v147
    %v411 = vunpack.c.l.b16 %v148
    %v412 = vunpack.c.l.b16 %v149
    %v413 = vunpack.c.l.b16 %v150
    %v414 = vunpack.c.l.b16 %v151
    %v415 = vunpack.c.l.b16 %v152
    %v416 = vunpack.c.l.b16 %v153
    %v417 = vunpack.c.l.b16 %v154
    %v418 = vunpack.c.l.b16 %v155
    %v419 = vunpack.c.l.b16 %v156
    %v420 = vunpack.c.l.b16 %v157
    %v421 = vunpack.c.l.b16 %v158
    %v422 = vunpack.c.l.b16 %v159
    %v423 = vunpack.c.l.b16 %v160
    %v424 = vunpack.c.l.b16 %v161
    %v425 = vunpack.c.l.b16 %v162
    %v426 = vunpack.c.l.b16 %v163
    %v427 = vunpack.c.l.b16 %v164
    %v428 = vunpack.c.l.b16 %v165
    %v429 = vunpack.c.l.b16 %v166
    %v430 = vunpack.c.l.b16 %v167
    %v431 = vunpack.c.l.b16 %v168
    %v432 = vunpack.c.l.b16 %v169
    %v433 = vunpack.c.l.b16 %v170
    %v434 = vunpack.c.l.b16 %v171
    %v435 = vunpack.c.l.b16 %v172
    %v436 = vunpack.c.l.b16 %v173
    %v437 = vunpack.c.l.b16 %v174
    %v438 = vunpack.c.l.b16 %v175
    %v439 = vunpack.c.l.b16 %v176
    %v440 = vunpack.c.l.b16 %v177
    %v441 = vunpack.c.l.b16 %v178
    %v442 = vunpack.c.l.b16 %v179
    %v443 = vunpack.c.l.b16 %v180
    %v444 = vunpack.c.l.b16 %v181
    %v445 = vunpack.c.l.b16 %v182
    %v446 = vunpack.c.l.b16 %v183
    %v447 = vunpack.c.l.b16 %v184
    %v448 = vunpack.c.l.b16 %v185
    %v449 = vunpack.c.l.b16 %v186
    %v450 = vunpack.c.l.b16 %v187
    %v451 = vunpack.c.l.b16 %v188
    %v452 = vunpack.c.l.b16 %v189
    %v453 = vunpack.c.l.b16 %v190
    %v454 = vunpack.c.l.b16 %v191
    %v455 = vunpack.c.l.b16 %v192
    %v456 = vunpack.c.l.b16 %v193
    %v457 = vunpack.c.l.b16 %v194
    %v458 = vunpack.c.l.b16 %v195
    %v459 = vunpack.c.l.b16 %v196
    %v460 = vunpack.c.l.b16 %v197
    %v461 = vunpack.c.l.b16 %v198
    %v462 = vunpack.c.l.b16 %v199
    %v463 = vunpack.c.l.b16 %v200
    %v464 = vunpack.c.l.b16 %v201
    %v465 = vunpack.c.l.b16 %v202
    %v466 = vunpack.c.l.b16 %v203
    %v467 = vunpack.c.l.b16 %v204
    %v468 = vunpack.c.l.b16 %v205
    %v469 = vunpack.c.l.b16 %v206
    %v470 = vunpack.c.l.b16 %v207
    %v471 = vunpack.c.l.b16 %v208
    %v472 = vunpack.c.l.b16 %v209
    %v473 = vunpack.c.l.b16 %v210
    %v474 = vunpack.c.l.b16 %v211
    %v475 = vunpack.c.l.b16 %v212
    %v476 = vunpack.c.l.b16 %v213
    %v477 = vunpack.c.l.b16 %v214
    %v478 = vunpack.c.l.b16 %v215
    %v479 = vunpack.c.l.b16 %v216
    %v480 = vunpack.c.l.b16 %v217
    %v481 = vunpack.c.l.b16 %v218
    %v482 = vunpack.c.l.b16 %v219
    %v483 = vunpack.c.l.b16 %v220
    %v484 = vunpack.c.l.b16 %v221
    %v485 = vunpack.c.l.b16 %v222
    %v486 = vunpack.c.l.b16 %v223
    %v487 = vunpack.c.l.b16 %v224
    %v488 = vunpack.c.l.b16 %v225
    %v489 = vunpack.c.l.b16 %v226
    %v490 = vunpack.c.l.b16 %v227
    %v491 = vunpack.c.l.b16 %v228
    %v492 = vunpack.c.l.b16 %v229
    %v493 = vunpack.c.l.b16 %v230
    %v494 = vunpack.c.l.b16 %v231
    %v495 = vunpack.c.l.b16 %v232
    %v496 = vunpack.c.l.b16 %v233
    %v497 = vunpack.c.l.b16 %v234
    %v498 = vunpack.c.l.b16 %v235
    %v499 = vunpack.c.l.b16 %v236
    %v500 = vunpack.c.l.b16 %v237
    %v501 = vunpack.c.l.b16 %v238
    %v502 = vunpack.c.l.b16 %v239
    %v503 = vunpack.c.l.b16 %v240
    %v504 = vunpack.c.l.b16 %v241
    %v505 = vunpack.c.l.b16 %v242
    %v506 = vunpack.c.l.b16 %v243
    %v507 = vunpack.c.l.b16 %v244
    %v508 = vunpack.c.l.b16 %v245
    %v509 = vunpack.c.l.b16 %v246
    %v510 = vunpack.c.l.b16 %v247
    %v511 = vunpack.c.l.b16 %v248
    %v512 = vunpack.c.l.b16 %v249
    %v513 = vunpack.c.l.b16 %v250
    %v514 = vunpack.c.l.b16 %v251
    %v515 = vunpack.c.l.b16 %v252
    %v516 = vunpack.c.l.b16 %v253
    %v517 = vpack.c.b16 %v390, %v389
    %v518 = vpack.c.b16 %v392, %v391
    %v519 = vpack.c.b16 %v394, %v393
    %v520 = vpack.c.b16 %v396, %v395
    %v521 = vpack.c.b16 %v398, %v397
    %v522 = vpack.c.b16 %v400, %v399
    %v523 = vpack.c.b16 %v402, %v401
    %v524 = vpack.c.b16 %v404, %v403
    %v525 = vpack.c.b16 %v406, %v405
    %v526 = vpack.c.b16 %v408, %v407
    %v527 = vpack.c.b16 %v410, %v409
    %v528 = vpack.c.b16 %v412, %v411
    %v529 = vpack.c.b16 %v414, %v413
    %v530 = vpack.c.b16 %v416, %v415
    %v531 = vpack.c.b16 %v418, %v417
    %v532 = vpack.c.b16 %v420, %v419
    %v533 = vpack.c.b16 %v422, %v421
    %v534 = vpack.c.b16 %v424, %v423
    %v535 = vpack.c.b16 %v426, %v425
    %v536 = vpack.c.b16 %v428, %v427
    %v537 = vpack.c.b16 %v430, %v429
    %v538 = vpack.c.b16 %v432, %v431
    %v539 = vpack.c.b16 %v434, %v433
    %v540 = vpack.c.b16 %v436, %v435
    %v541 = vpack.c.b16 %v438, %v437
    %v542 = vpack.c.b16 %v440, %v439
    %v543 = vpack.c.b16 %v442, %v441
    %v544 = vpack.c.b16 %v444, %v443
    %v545 = vpack.c.b16 %v446, %v445
    %v546 = vpack.c.b16 %v448, %v447
    %v547 = vpack.c.b16 %v450, %v449
    %v548 = vpack.c.b16 %v452, %v451
    %v549 = vpack.c.b16 %v454, %v453
    %v550 = vpack.c.b16 %v456, %v455
    %v551 = vpack.c.b16 %v458, %v457
    %v552 = vpack.c.b16 %v460, %v459
    %v553 = vpack.c.b16 %v462, %v461
    %v554 = vpack.c.b16 %v464, %v463
    %v555 = vpack.c.b16 %v466, %v465
    %v556 = vpack.c.b16 %v468, %v467
    %v557 = vpack.c.b16 %v470, %v469
    %v558 = vpack.c.b16 %v472, %v471
    %v559 = vpack.c.b16 %v474, %v473
    %v560 = vpack.c.b16 %v476, %v475
    %v561 = vpack.c.b16 %v478, %v477
    %v562 = vpack.c.b16 %v480, %v479
    %v563 = vpack.c.b16 %v482, %v481
    %v564 = vpack.c.b16 %v484, %v483
    %v565 = vpack.c.b16 %v486, %v485
    %v566 = vpack.c.b16 %v488, %v487
    %v567 = vpack.c.b16 %v490, %v489
    %v568 = vpack.c.b16 %v492, %v491
    %v569 = vpack.c.b16 %v494, %v493
    %v570 = vpack.c.b16 %v496, %v495
    %v571 = vpack.c.b16 %v498, %v497
    %v572 = vpack.c.b16 %v500, %v499
    %v573 = vpack.c.b16 %v502, %v501
    %v574 = vpack.c.b16 %v504, %v503
    %v575 = vpack.c.b16 %v506, %v505
    %v576 = vpack.c.b16 %v508, %v507
    %v577 = vpack.c.b16 %v510, %v509
    %v578 = vpack.c.b16 %v512, %v511
    %v579 = vpack.c.b16 %v514, %v513
    %v580 = vpack.c.b16 %v516, %v515
    %645 = vmatprep.subr.bf16.mxu0 0
    %646 = vmatpush1.bf16.msra.mxu0 %v517
    %647 = vmatprep.subr.bf16.mxu0 0
    %648 = vmatpush1.bf16.msra.mxu0 %v518
    %649 = vmatprep.subr.bf16.mxu0 0
    %650 = vmatpush1.bf16.msra.mxu0 %v519
    %651 = vmatprep.subr.bf16.mxu0 0
    %652 = vmatpush1.bf16.msra.mxu0 %v520
    %653 = vmatprep.subr.bf16.mxu0 0
    %654 = vmatpush1.bf16.msra.mxu0 %v521
    %655 = vmatprep.subr.bf16.mxu0 0
    %656 = vmatpush1.bf16.msra.mxu0 %v522
    %657 = vmatprep.subr.bf16.mxu0 0
    %658 = vmatpush1.bf16.msra.mxu0 %v523
    %659 = vmatprep.subr.bf16.mxu0 0
    %660 = vmatpush1.bf16.msra.mxu0 %v524
    %661 = vmatprep.subr.bf16.mxu0 0
    %662 = vmatpush1.bf16.msra.mxu0 %v525
    %663 = vmatprep.subr.bf16.mxu0 0
    %664 = vmatpush1.bf16.msra.mxu0 %v526
    %665 = vmatprep.subr.bf16.mxu0 0
    %666 = vmatpush1.bf16.msra.mxu0 %v527
    %667 = vmatprep.subr.bf16.mxu0 0
    %668 = vmatpush1.bf16.msra.mxu0 %v528
    %669 = vmatprep.subr.bf16.mxu0 0
    %670 = vmatpush1.bf16.msra.mxu0 %v529
    %671 = vmatprep.subr.bf16.mxu0 0
    %672 = vmatpush1.bf16.msra.mxu0 %v530
    %673 = vmatprep.subr.bf16.mxu0 0
    %674 = vmatpush1.bf16.msra.mxu0 %v531
    %675 = vmatprep.subr.bf16.mxu0 0
    %676 = vmatpush1.bf16.msra.mxu0 %v532
    %677 = vmatprep.mubr.bf16.mxu0 %v119
    %678 = vmatmul.mubr.bf16.gmra.mrb[0].mxu0 %v118
    %v679 = vpop.f32.mrb[0].mxu0
    %v680 = vadd.f32 %v259, %v679
    %v681 = vpop.f32.mrb[0].mxu0
    %v682 = vpop.f32.mrb[0].mxu0
    %v683 = vpop.f32.mrb[0].mxu0
    %684 = vdwg.mxu0
    %685 = vmatprep.subr.bf16.mxu0 0
    %686 = vmatpush1.bf16.msra.mxu0 %v533
    %687 = vmatprep.subr.bf16.mxu0 0
    %688 = vmatpush1.bf16.msra.mxu0 %v534
    %689 = vmatprep.subr.bf16.mxu0 0
    %690 = vmatpush1.bf16.msra.mxu0 %v535
    %691 = vmatprep.subr.bf16.mxu0 0
    %692 = vmatpush1.bf16.msra.mxu0 %v536
    %693 = vmatprep.subr.bf16.mxu0 0
    %694 = vmatpush1.bf16.msra.mxu0 %v537
    %695 = vmatprep.subr.bf16.mxu0 0
    %696 = vmatpush1.bf16.msra.mxu0 %v538
    %697 = vmatprep.subr.bf16.mxu0 0
    %698 = vmatpush1.bf16.msra.mxu0 %v539
    %699 = vmatprep.subr.bf16.mxu0 0
    %700 = vmatpush1.bf16.msra.mxu0 %v540
    %701 = vmatprep.subr.bf16.mxu0 0
    %702 = vmatpush1.bf16.msra.mxu0 %v541
    %703 = vmatprep.subr.bf16.mxu0 0
    %704 = vmatpush1.bf16.msra.mxu0 %v542
    %705 = vmatprep.subr.bf16.mxu0 0
    %706 = vmatpush1.bf16.msra.mxu0 %v543
    %707 = vmatprep.subr.bf16.mxu0 0
    %708 = vmatpush1.bf16.msra.mxu0 %v544
    %709 = vmatprep.subr.bf16.mxu0 0
    %710 = vmatpush1.bf16.msra.mxu0 %v545
    %711 = vmatprep.subr.bf16.mxu0 0
    %712 = vmatpush1.bf16.msra.mxu0 %v546
    %713 = vmatprep.subr.bf16.mxu0 0
    %714 = vmatpush1.bf16.msra.mxu0 %v547
    %715 = vmatprep.subr.bf16.mxu0 0
    %716 = vmatpush1.bf16.msra.mxu0 %v548
    %717 = vmatprep.mubr.bf16.mxu0 %v121
    %718 = vmatmul.mubr.bf16.gmra.mrb[0].mxu0 %v120
    %v719 = vpop.f32.mrb[0].mxu0
    %v720 = vadd.f32 %v680, %v719
    %v721 = vpop.f32.mrb[0].mxu0
    %v722 = vpop.f32.mrb[0].mxu0
    %v723 = vpop.f32.mrb[0].mxu0
    %724 = vdwg.mxu0
    %725 = vmatprep.subr.bf16.mxu0 0
    %726 = vmatpush1.bf16.msra.mxu0 %v549
    %727 = vmatprep.subr.bf16.mxu0 0
    %728 = vmatpush1.bf16.msra.mxu0 %v550
    %729 = vmatprep.subr.bf16.mxu0 0
    %730 = vmatpush1.bf16.msra.mxu0 %v551
    %731 = vmatprep.subr.bf16.mxu0 0
    %732 = vmatpush1.bf16.msra.mxu0 %v552
    %733 = vmatprep.subr.bf16.mxu0 0
    %734 = vmatpush1.bf16.msra.mxu0 %v553
    %735 = vmatprep.subr.bf16.mxu0 0
    %736 = vmatpush1.bf16.msra.mxu0 %v554
    %737 = vmatprep.subr.bf16.mxu0 0
    %738 = vmatpush1.bf16.msra.mxu0 %v555
    %739 = vmatprep.subr.bf16.mxu0 0
    %740 = vmatpush1.bf16.msra.mxu0 %v556
    %741 = vmatprep.subr.bf16.mxu0 0
    %742 = vmatpush1.bf16.msra.mxu0 %v557
    %743 = vmatprep.subr.bf16.mxu0 0
    %744 = vmatpush1.bf16.msra.mxu0 %v558
    %745 = vmatprep.subr.bf16.mxu0 0
    %746 = vmatpush1.bf16.msra.mxu0 %v559
    %747 = vmatprep.subr.bf16.mxu0 0
    %748 = vmatpush1.bf16.msra.mxu0 %v560
    %749 = vmatprep.subr.bf16.mxu0 0
    %750 = vmatpush1.bf16.msra.mxu0 %v561
    %751 = vmatprep.subr.bf16.mxu0 0
    %752 = vmatpush1.bf16.msra.mxu0 %v562
    %753 = vmatprep.subr.bf16.mxu0 0
    %754 = vmatpush1.bf16.msra.mxu0 %v563
    %755 = vmatprep.subr.bf16.mxu0 0
    %756 = vmatpush1.bf16.msra.mxu0 %v564
    %757 = vmatprep.mubr.bf16.mxu0 %v123
    %758 = vmatmul.mubr.bf16.gmra.mrb[0].mxu0 %v122
    %v759 = vpop.f32.mrb[0].mxu0
    %v760 = vadd.f32 %v720, %v759
    %v761 = vpop.f32.mrb[0].mxu0
    %v762 = vpop.f32.mrb[0].mxu0
    %v763 = vpop.f32.mrb[0].mxu0
    %764 = vdwg.mxu0
    %765 = vmatprep.subr.bf16.mxu0 0
    %766 = vmatpush1.bf16.msra.mxu0 %v565
    %767 = vmatprep.subr.bf16.mxu0 0
    %768 = vmatpush1.bf16.msra.mxu0 %v566
    %769 = vmatprep.subr.bf16.mxu0 0
    %770 = vmatpush1.bf16.msra.mxu0 %v567
    %771 = vmatprep.subr.bf16.mxu0 0
    %772 = vmatpush1.bf16.msra.mxu0 %v568
    %773 = vmatprep.subr.bf16.mxu0 0
    %774 = vmatpush1.bf16.msra.mxu0 %v569
    %775 = vmatprep.subr.bf16.mxu0 0
    %776 = vmatpush1.bf16.msra.mxu0 %v570
    %777 = vmatprep.subr.bf16.mxu0 0
    %778 = vmatpush1.bf16.msra.mxu0 %v571
    %779 = vmatprep.subr.bf16.mxu0 0
    %780 = vmatpush1.bf16.msra.mxu0 %v572
    %781 = vmatprep.subr.bf16.mxu0 0
    %782 = vmatpush1.bf16.msra.mxu0 %v573
    %783 = vmatprep.subr.bf16.mxu0 0
    %784 = vmatpush1.bf16.msra.mxu0 %v574
    %785 = vmatprep.subr.bf16.mxu0 0
    %786 = vmatpush1.bf16.msra.mxu0 %v575
    %787 = vmatprep.subr.bf16.mxu0 0
    %788 = vmatpush1.bf16.msra.mxu0 %v576
    %789 = vmatprep.subr.bf16.mxu0 0
    %790 = vmatpush1.bf16.msra.mxu0 %v577
    %791 = vmatprep.subr.bf16.mxu0 0
    %792 = vmatpush1.bf16.msra.mxu0 %v578
    %793 = vmatprep.subr.bf16.mxu0 0
    %794 = vmatpush1.bf16.msra.mxu0 %v579
    %795 = vmatprep.subr.bf16.mxu0 0
    %796 = vmatpush1.bf16.msra.mxu0 %v580
    %797 = vmatprep.mubr.bf16.mxu0 %v125
    %798 = vmatmul.mubr.bf16.gmra.mrb[0].mxu0 %v124
    %v799 = vpop.f32.mrb[0].mxu0
    %v800 = vadd.f32 %v760, %v799
    %v801 = vpop.f32.mrb[0].mxu0
    %v802 = vpop.f32.mrb[0].mxu0
    %v803 = vpop.f32.mrb[0].mxu0
    %804 = vdwg.mxu0
    %vm805 = vcmp.gt.f32.partialorder %v800, 0.0
    %v806 = vmul.f32 %v800, 0.01
    %v807 = vsel %vm805, %v800, %v806
    %v808 = vpack.c.bf16 %v807, %v807
    %v809 = vld [vmem:[%s3] sm:$0xf]
    %v810 = vld [vmem:[%s3 + $0x4] sm:$0xf]
    %v811 = vld [vmem:[%s3 + $0x8] sm:$0xf]
    %v812 = vld [vmem:[%s3 + $0xc] sm:$0xf]
    %v813 = vld [vmem:[%s3 + $0x10] sm:$0xf]
    %v814 = vld [vmem:[%s3 + $0x14] sm:$0xf]
    %v815 = vld [vmem:[%s3 + $0x18] sm:$0xf]
    %v816 = vld [vmem:[%s3 + $0x1c] sm:$0xf]
    %v817 = vld [vmem:[%s3 + $0x20] sm:$0xf]
    %v818 = vld [vmem:[%s3 + $0x24] sm:$0xf]
    %v819 = vld [vmem:[%s3 + $0x28] sm:$0xf]
    %v820 = vld [vmem:[%s3 + $0x2c] sm:$0xf]
    %v821 = vld [vmem:[%s3 + $0x30] sm:$0xf]
    %v822 = vld [vmem:[%s3 + $0x34] sm:$0xf]
    %v823 = vld [vmem:[%s3 + $0x38] sm:$0xf]
    %v824 = vld [vmem:[%s3 + $0x3c] sm:$0xf]
    %v825 = vld [vmem:[%s4] sm:$0x1]
    %v827 = vlaneseq
    %v828 = vshrl.u32 %v827, 7
    %v829 = vsub.s32 0, %v828
    %v830 = vrot.slane %v825, %v829
    %v848 = vunpack.c.l.b16 %v809
    %v849 = vunpack.c.l.b16 %v810
    %v850 = vunpack.c.l.b16 %v811
    %v851 = vunpack.c.l.b16 %v812
    %v852 = vunpack.c.l.b16 %v813
    %v853 = vunpack.c.l.b16 %v814
    %v854 = vunpack.c.l.b16 %v815
    %v855 = vunpack.c.l.b16 %v816
    %v856 = vunpack.c.l.b16 %v817
    %v857 = vunpack.c.l.b16 %v818
    %v858 = vunpack.c.l.b16 %v819
    %v859 = vunpack.c.l.b16 %v820
    %v860 = vunpack.c.l.b16 %v821
    %v861 = vunpack.c.l.b16 %v822
    %v862 = vunpack.c.l.b16 %v823
    %v863 = vunpack.c.l.b16 %v824
    %v864 = vpack.c.b16 %v849, %v848
    %v865 = vpack.c.b16 %v851, %v850
    %v866 = vpack.c.b16 %v853, %v852
    %v867 = vpack.c.b16 %v855, %v854
    %v868 = vpack.c.b16 %v857, %v856
    %v869 = vpack.c.b16 %v859, %v858
    %v870 = vpack.c.b16 %v861, %v860
    %v871 = vpack.c.b16 %v863, %v862
    %880 = vmatprep.subr.bf16.mxu0 0
    %881 = vmatpush1.bf16.msra.mxu0 %v864
    %882 = vmatprep.subr.bf16.mxu0 0
    %883 = vmatpush1.bf16.msra.mxu0 %v865
    %884 = vmatprep.subr.bf16.mxu0 0
    %885 = vmatpush1.bf16.msra.mxu0 %v866
    %886 = vmatprep.subr.bf16.mxu0 0
    %887 = vmatpush1.bf16.msra.mxu0 %v867
    %888 = vmatprep.subr.bf16.mxu0 0
    %889 = vmatpush1.bf16.msra.mxu0 %v868
    %890 = vmatprep.subr.bf16.mxu0 0
    %891 = vmatpush1.bf16.msra.mxu0 %v869
    %892 = vmatprep.subr.bf16.mxu0 0
    %893 = vmatpush1.bf16.msra.mxu0 %v870
    %894 = vmatprep.subr.bf16.mxu0 0
    %895 = vmatpush1.bf16.msra.mxu0 %v871
    %896 = vmatprep.subr.bf16.mxu0 0
    %897 = vmatpush1.bf16.msra.mxu0 0
    %898 = vmatprep.subr.bf16.mxu0 0
    %899 = vmatpush1.bf16.msra.mxu0 0
    %900 = vmatprep.subr.bf16.mxu0 0
    %901 = vmatpush1.bf16.msra.mxu0 0
    %902 = vmatprep.subr.bf16.mxu0 0
    %903 = vmatpush1.bf16.msra.mxu0 0
    %904 = vmatprep.subr.bf16.mxu0 0
    %905 = vmatpush1.bf16.msra.mxu0 0
    %906 = vmatprep.subr.bf16.mxu0 0
    %907 = vmatpush1.bf16.msra.mxu0 0
    %908 = vmatprep.subr.bf16.mxu0 0
    %909 = vmatpush1.bf16.msra.mxu0 0
    %910 = vmatprep.subr.bf16.mxu0 0
    %911 = vmatpush1.bf16.msra.mxu0 0
    %912 = vmatprep.mubr.bf16.mxu0 0
    %913 = vmatmul.mubr.bf16.gmra.mrb[0].mxu0 %v808
    %v914 = vpop.f32.mrb[0].mxu0
    %v915 = vadd.f32 %v830, %v914
    %v916 = vpop.f32.mrb[0].mxu0
    %v917 = vpop.f32.mrb[0].mxu0
    %v918 = vpop.f32.mrb[0].mxu0
    %919 = vdwg.mxu0
    %vm920 = vcmp.gt.f32.partialorder %v915, 0.0
    %v921 = vmul.f32 %v915, 0.01
    %v922 = vsel %vm920, %v915, %v921
    %v923 = vlaneseq
    %v924 = vand.u32 %v923, 127
    %vm925 = vcmp.lt.s32.totalorder %v924, 10
    %v926 = vsel %vm925, %v922, -1e+30
    %927 = vmax.xlane.f32.xlu0 %v926
    %v928 = vpop.xlane.xlu0 %927
    %v929 = vsub.f32 %v926, %v928
    %v930 = vmul.f32 %v929, 1.442695
    %v931 = vpow.pop %v930
    %932 = vadd.xlane.f32.xlu0 %v931
    %v933 = vpop.xlane.xlu0 %932
    %v934 = vlog2.pop %v933
    %v935 = vmul.f32 %v934, 0.6931472
    %v936 = vsub.f32 %v929, %v935
    %vm937 = vcmask 80896
    %938 = vst.msk [vmem:[#allocation2] sm:$0xff] %vm937, %v936
    // Predicated region
    $region22: #{mlp_forward.1} parent=1 // pred_check
      _
    $region23: #{mlp_forward.1} parent=1 // pred_check_branch
      %940 = sbr.rel (0) target = $region25
    $region24: #{mlp_forward.1} parent=1 // pred_region
      %s942 = ssub.s32 128, 32
      %943 = vsyncadd [#allocation3], %s942
      %s944 = sshll.u32 [#allocation2], 4
      %s945 = int_to_ptr.vmem [resolvable:$true] %s944
      %950 = dma.vmem_to_hbm [thread:$0]  %s945, 32, %s5, [#allocation3], 32, 32, 2
    $region25: #{mlp_forward.1} parent=1 // pred_fallthru
      _
    // Predicated region
    $region26: #{mlp_forward.1} parent=1 // pred_check
      _
    $region27: #{mlp_forward.1} parent=1 // pred_check_branch
      %952 = sbr.rel (0) target = $region29
    $region28: #{mlp_forward.1} parent=1 // pred_region
      %953 = dma.done [#allocation3], 128
    $region29: #{mlp_forward.1} parent=1 // pred_fallthru
      _
    %954 = vsyncpa [#allocation3], 1

</llo_original>
